<compile_context>
chip_gen: v7x
topology: tpu7x:2x2x1
jax: 0.10.0
libtpu: 0.0.40
codegen_flags: <defaults>
</compile_context>

<pallas_src>
import functools

import jax
import jax.numpy as jnp
from jax.experimental import pallas as pl
from jax.experimental.pallas import tpu as pltpu


def _nll_smoothing_kernel(pred_ref, tgt_ref, out_ref, *, smoothing, num_classes,
                          class_tile):
    """One (row_tile, class_tile) block: accumulate per-row partial losses."""
    k = pl.program_id(1)                                  # class-tile index
    confidence = jnp.float32(1.0 - smoothing)
    off_value = jnp.float32(smoothing / (num_classes - 1))  # GLOBAL C

    pred = pred_ref[...].astype(jnp.float32)              # (TN, TC)
    tgt = tgt_ref[...]                                     # (TN, 1) int32

    # Global class index of each column in this block.
    col = jax.lax.broadcasted_iota(jnp.int32, pred.shape, 1) + k * class_tile
    pred_at_tgt = jnp.sum(jnp.where(col == tgt, pred, 0.0), axis=-1, keepdims=True)
    row_sum = jnp.sum(pred, axis=-1, keepdims=True)

    # loss = -(off * sum(pred) + (conf - off) * pred[target])
    partial = -(off_value * row_sum + (confidence - off_value) * pred_at_tgt)

    @pl.when(k == 0)
    def _():
        out_ref[...] = jnp.zeros_like(out_ref)

    out_ref[...] += partial


def _pick_row_tile(n):
    if n >= 512:
        return 512
    return max(8, ((n + 7) // 8) * 8)          # full (sublane-padded) rows


def _pick_class_tile(c, tn, elem_bytes, budget_bytes=4 * 1024 * 1024):
    if c * tn * elem_bytes <= budget_bytes:
        return c, c                             # no class tiling / padding
    tc = max(128, (budget_bytes // (tn * elem_bytes)) // 128 * 128)
    c_pad = ((c + tc - 1) // tc) * tc
    return tc, c_pad


def nll_smoothing(pred, target, smoothing=0.0, reduction="mean"):
    """pred: (N, C) float32/bfloat16 log-probs; target: (N,) integer classes."""
    n, c = pred.shape
    if pred.dtype not in (jnp.float32, jnp.bfloat16):
        pred = pred.astype(jnp.float32)
    tgt2d = target.astype(jnp.int32).reshape(n, 1)

    tn = _pick_row_tile(n)
    n_pad = pl.cdiv(n, tn) * tn
    elem_bytes = jnp.dtype(pred.dtype).itemsize
    tc, c_pad = _pick_class_tile(c, tn, elem_bytes)

    if n_pad != n or c_pad != c:
        # Zero-padded rows/classes contribute exactly 0 to every row loss.
        pred = jnp.pad(pred, ((0, n_pad - n), (0, c_pad - c)))
    if n_pad != n:
        tgt2d = jnp.pad(tgt2d, ((0, n_pad - n), (0, 0)))

    grid = (n_pad // tn, c_pad // tc)
    kernel = functools.partial(
        _nll_smoothing_kernel,
        smoothing=float(smoothing),
        num_classes=c,
        class_tile=tc,
    )

    losses = pl.pallas_call(
        kernel,
        out_shape=jax.ShapeDtypeStruct((n_pad, 1), jnp.float32),
        grid_spec=pltpu.PrefetchScalarGridSpec(
            num_scalar_prefetch=0,
            grid=grid,
            in_specs=[
                pl.BlockSpec((tn, tc), lambda i, k: (i, k)),   # pred tile
                pl.BlockSpec((tn, 1), lambda i, k: (i, 0)),    # targets
            ],
            out_specs=pl.BlockSpec((tn, 1), lambda i, k: (i, 0)),
        ),
        compiler_params=pltpu.CompilerParams(
            dimension_semantics=("parallel", "arbitrary"),
        ),
    )(pred, tgt2d)

    if reduction == "mean":
        return jnp.sum(losses) / n              # padded rows are exactly 0
    return losses[:n, 0]


def _reference(pred, target, smoothing, reduction="mean"):
    n, c = pred.shape
    confidence = 1.0 - smoothing
    true_dist = jnp.full((n, c), smoothing / (c - 1), dtype=jnp.float32)
    true_dist = true_dist.at[jnp.arange(n), target].set(confidence)
    loss = jnp.sum(-true_dist * pred.astype(jnp.float32), axis=-1)
    return jnp.mean(loss) if reduction == "mean" else loss


if __name__ == "__main__":
    key = jax.random.PRNGKey(0)
    smoothing = 0.1
    ok = True

    # Case 1: tiny shape from the module spec (N=8, C=32) — single tile.
    k1, k2, k3, k4 = jax.random.split(key, 4)
    N1, C1 = 8, 32
    pred1 = jax.nn.log_softmax(jax.random.normal(k1, (N1, C1), jnp.float32), axis=-1)
    tgt1 = jax.random.randint(k2, (N1,), 0, C1, dtype=jnp.int32)

    out_mean1 = nll_smoothing(pred1, tgt1, smoothing=smoothing, reduction="mean")
    out_none1 = nll_smoothing(pred1, tgt1, smoothing=smoothing, reduction="none")
    jax.block_until_ready(out_mean1)
    jax.block_until_ready(out_none1)
    ok &= bool(jnp.allclose(out_mean1, _reference(pred1, tgt1, smoothing, "mean"),
                            atol=1e-5, rtol=1e-5))
    ok &= bool(jnp.allclose(out_none1, _reference(pred1, tgt1, smoothing, "none"),
                            atol=1e-5, rtol=1e-5))

    # Case 2: non-aligned rows (N=50, C=300) — exercises row padding path.
    N2, C2 = 50, 300
    pred2 = jax.nn.log_softmax(jax.random.normal(k3, (N2, C2), jnp.float32), axis=-1)
    tgt2 = jax.random.randint(k4, (N2,), 0, C2, dtype=jnp.int32)

    out_mean2 = nll_smoothing(pred2, tgt2, smoothing=smoothing, reduction="mean")
    out_none2 = nll_smoothing(pred2, tgt2, smoothing=smoothing, reduction="none")
    jax.block_until_ready(out_mean2)
    jax.block_until_ready(out_none2)
    ok &= bool(jnp.allclose(out_mean2, _reference(pred2, tgt2, smoothing, "mean"),
                            atol=1e-5, rtol=1e-5))
    ok &= bool(jnp.allclose(out_none2, _reference(pred2, tgt2, smoothing, "none"),
                            atol=1e-5, rtol=1e-5))

    assert ok
    print("KERNEL_OK")
</pallas_src>

<mosaic_0001>
module attributes {stable_mosaic.version = 11 : i64} {
  func.func @_nll_smoothing_kernel(%arg0: i32, %arg1: i32, %arg2: memref<8x32xf32, #tpu.memory_space<vmem>>, %arg3: memref<8x1xi32, #tpu.memory_space<vmem>>, %arg4: memref<8x1xf32, #tpu.memory_space<vmem>>) attributes {dimension_semantics = [#tpu.dimension_semantics<parallel>, #tpu.dimension_semantics<arbitrary>], iteration_bounds = array<i64: 1, 1>, scalar_prefetch = 0 : i64, scratch_operands = 0 : i64, tpu.core_type = #tpu.core_type<tc>, window_params = [{transform_indices = @transform_0, window_bounds = array<i64: 8, 32>}, {transform_indices = @transform_1, window_bounds = array<i64: 8, 1>}, {transform_indices = @transform_2, window_bounds = array<i64: 8, 1>}]} {
    %c0 = arith.constant 0 : index
    %c0_0 = arith.constant 0 : index
    %0 = vector.load %arg2[%c0, %c0_0] : memref<8x32xf32, #tpu.memory_space<vmem>>, vector<8x32xf32>
    %c0_1 = arith.constant 0 : index
    %c0_2 = arith.constant 0 : index
    %1 = vector.load %arg3[%c0_1, %c0_2] : memref<8x1xi32, #tpu.memory_space<vmem>>, vector<8x1xi32>
    %2 = tpu.iota {dimensions = array<i32: 1>} : vector<8x32xi32>
    %c32_i32 = arith.constant 32 : i32
    %3 = arith.muli %arg1, %c32_i32 : i32
    %4 = vector.broadcast %3 : i32 to vector<8x32xi32>
    %5 = arith.addi %2, %4 : vector<8x32xi32>
    %6 = vector.broadcast %1 : vector<8x1xi32> to vector<8x32xi32>
    %7 = arith.cmpi eq, %5, %6 : vector<8x32xi32>
    %cst = arith.constant 0.000000e+00 : f32
    %8 = vector.broadcast %cst : f32 to vector<8x32xf32>
    %9 = arith.select %7, %0, %8 : vector<8x32xi1>, vector<8x32xf32>
    %cst_3 = arith.constant dense<0.000000e+00> : vector<8xf32>
    %10 = vector.multi_reduction <add>, %9, %cst_3 [1] : vector<8x32xf32> to vector<8xf32>
    %11 = vector.shape_cast %10 : vector<8xf32> to vector<8x1xf32>
    %cst_4 = arith.constant dense<0.000000e+00> : vector<8xf32>
    %12 = vector.multi_reduction <add>, %0, %cst_4 [1] : vector<8x32xf32> to vector<8xf32>
    %13 = vector.shape_cast %12 : vector<8xf32> to vector<8x1xf32>
    %cst_5 = arith.constant 0.0032258064 : f32
    %14 = vector.broadcast %cst_5 : f32 to vector<8x1xf32>
    %15 = arith.mulf %14, %13 : vector<8x1xf32>
    %cst_6 = arith.constant 0.899999976 : f32
    %cst_7 = arith.constant 0.0032258064 : f32
    %16 = arith.subf %cst_6, %cst_7 : f32
    %17 = vector.broadcast %16 : f32 to vector<8x1xf32>
    %18 = arith.mulf %17, %11 : vector<8x1xf32>
    %19 = arith.addf %15, %18 : vector<8x1xf32>
    %cst_8 = arith.constant 0.000000e+00 : f32
    %20 = vector.broadcast %cst_8 : f32 to vector<8x1xf32>
    %21 = arith.subf %20, %19 : vector<8x1xf32>
    %c0_i32 = arith.constant 0 : i32
    %22 = arith.cmpi eq, %arg1, %c0_i32 : i32
    %23 = arith.extui %22 : i1 to i32
    %c0_i32_9 = arith.constant 0 : i32
    %24 = arith.cmpi ne, %23, %c0_i32_9 : i32
    scf.if %24 {
      %cst_14 = arith.constant 0.000000e+00 : f32
      %28 = vector.broadcast %cst_14 : f32 to vector<8x1xf32>
      %c0_15 = arith.constant 0 : index
      %c0_16 = arith.constant 0 : index
      %29 = vector.load %arg4[%c0_15, %c0_16] : memref<8x1xf32, #tpu.memory_space<vmem>>, vector<8x1xf32>
      tpu.vector_store %arg4[%c0_15, %c0_16], %28 {strides = array<i32>} : memref<8x1xf32, #tpu.memory_space<vmem>>, vector<8x1xf32>,
    } else {
    }
    %c0_10 = arith.constant 0 : index
    %c0_11 = arith.constant 0 : index
    %25 = vector.load %arg4[%c0_10, %c0_11] : memref<8x1xf32, #tpu.memory_space<vmem>>, vector<8x1xf32>
    %26 = arith.addf %25, %21 : vector<8x1xf32>
    %c0_12 = arith.constant 0 : index
    %c0_13 = arith.constant 0 : index
    %27 = vector.load %arg4[%c0_12, %c0_13] : memref<8x1xf32, #tpu.memory_space<vmem>>, vector<8x1xf32>
    tpu.vector_store %arg4[%c0_12, %c0_13], %26 {strides = array<i32>} : memref<8x1xf32, #tpu.memory_space<vmem>>, vector<8x1xf32>,
    return
  }
  func.func @transform_0(%arg0: i32, %arg1: i32) -> (i32, i32) {
    %c0_i32 = arith.constant 0 : i32
    return %arg0, %arg1 : i32, i32
  }
  func.func @transform_1(%arg0: i32, %arg1: i32) -> (i32, i32) {
    %c0_i32 = arith.constant 0 : i32
    %c0_i32_0 = arith.constant 0 : i32
    return %arg0, %c0_i32 : i32, i32
  }
  func.func @transform_2(%arg0: i32, %arg1: i32) -> (i32, i32) {
    %c0_i32 = arith.constant 0 : i32
    %c0_i32_0 = arith.constant 0 : i32
    return %arg0, %c0_i32 : i32, i32
  }
}

</mosaic_0001>

<llo_original>
// kernel: tpu_custom_call.1
$region0: #{tpu_custom_call.1}
  #allocation0 [shape = 'u32[]', space=smem, size = 0x4, offset = 0x4, fixed_abs, tag = 'smem constant byte address 0x4 - core index']
  #allocation1 [shape = 'u32[144,128]{1,0:T(1,128)}', space=vmem, size = 0x12000, scoped, tag = 'internal scratch']
  %s0 = inlined_call_operand.vmem [shape: f32[8,32], index: 0, kind: input, shape index: {}]
  %s1 = inlined_call_operand.vmem [shape: s32[8,1], index: 1, kind: input, shape index: {}]
  %s2 = inlined_call_operand.vmem [shape: f32[8,1], index: 2, kind: output, shape index: {}]
  %s3 = sld [smem:[#allocation0]]
  $region22: #{tpu_custom_call.1} parent=0
    _
  %s5 = ssub.s32 1, %s3
  %s6 = scalar_select 0, %s5, %s3
  // Predicated region
  $region2: #{tpu_custom_call.1} parent=0 // pred_check
    _
  $region3: #{tpu_custom_call.1} parent=0 // pred_check_branch
    %8 = sbr.rel (0) target = $region5
  $region4: #{tpu_custom_call.1} parent=0 // pred_region
    _
  $region5: #{tpu_custom_call.1} parent=0 // pred_fallthru
    _
  // Predicated region
  $region6: #{tpu_custom_call.1} parent=0 // pred_check
    _
  $region7: #{tpu_custom_call.1} parent=0 // pred_check_branch
    %10 = sbr.rel (0) target = $region9
  $region8: #{tpu_custom_call.1} parent=0 // pred_region
    _
  $region9: #{tpu_custom_call.1} parent=0 // pred_fallthru
    _
  %v11 = vld [vmem:[%s0] sm:$0xff]
  %v12 = vld [vmem:[%s1] sm:$0xff]
  %v13 = vlaneseq
  %v14 = vand.u32 %v13, 127
  %s15 = smul.u32 0, 32
  %v16 = vstv %s15
  %v17 = vadd.s32 %v14, %v16
  %18 = vset.pattern.permute.xlu0 0
  %19 = vperm.xlu0 %18, %v12
  %v20 = vpop.permute.xlu0 %19
  %vm21 = vcmp.eq.s32.totalorder %v17, %v20
  %v22 = vsel %vm21, %v11, 0.0
  %vm23 = vcmask 261120
  %v24 = vsel %vm23, %v22, 0.0
  %25 = vadd.xlane.f32.xlu0 %v24
  %v26 = vpop.xlane.xlu0 %25
  %v27 = vsel %vm23, %v11, 0.0
  %28 = vadd.xlane.f32.xlu0 %v27
  %v29 = vpop.xlane.xlu0 %28
  %v30 = vmul.f32 %v29, 0.0032258064
  %v31 = vmul.f32 %v26, 0.8967742
  %v32 = vadd.f32 %v30, %v31
  %v33 = vsub.f32 0.0, %v32
  %p34 = scmp.eq.s32.totalorder 0, 0
  // Predicated region
  $region10: #{tpu_custom_call.1} parent=0 // pred_check
    %p35 = pneg %p34
  $region11: #{tpu_custom_call.1} parent=0 // pred_check_branch
    %37 = sbr.rel (%p35) target = $region13
  $region12: #{tpu_custom_call.1} parent=0 // pred_region
    %vm38 = vcmask 7168
    %39 = vst.msk [vmem:[%s2] sm:$0xff] %vm38, 0.0
  $region13: #{tpu_custom_call.1} parent=0 // pred_fallthru
    _
  %v40 = vld [vmem:[%s2] sm:$0xff]
  %v41 = vadd.f32 %v40, %v33
  %vm42 = vcmask 7168
  %43 = vst.msk [vmem:[%s2] sm:$0xff] %vm42, %v41
  // Predicated region
  $region14: #{tpu_custom_call.1} parent=0 // pred_check
    _
  $region15: #{tpu_custom_call.1} parent=0 // pred_check_branch
    %45 = sbr.rel (0) target = $region17
  $region16: #{tpu_custom_call.1} parent=0 // pred_region
    _
  $region17: #{tpu_custom_call.1} parent=0 // pred_fallthru
    _
  // Predicated region
  $region18: #{tpu_custom_call.1} parent=0 // pred_check
    _
  $region19: #{tpu_custom_call.1} parent=0 // pred_check_branch
    %47 = sbr.rel (0) target = $region21
  $region20: #{tpu_custom_call.1} parent=0 // pred_region
    _
  $region21: #{tpu_custom_call.1} parent=0 // pred_fallthru
    _

</llo_original>
